<compile_context>
chip_gen: v7x
topology: tpu7x:2x2x1
jax: 0.10.0
libtpu: 0.0.40
codegen_flags: <defaults>
</compile_context>

<pallas_src>
import functools

import jax
import jax.numpy as jnp
from jax.experimental import pallas as pl
from jax.experimental.pallas import tpu as pltpu

_BN_EPS = 1e-5


# ----------------------------------------------------------------------------
# Fully fused kernel: [bf16 matmul -> f32 bias -> ReLU6] * L  -> VPU dot(.,1)
# ----------------------------------------------------------------------------
def _fcn_fused_kernel(*refs, num_layers):
    # refs = x, (w0, b0), (w1, b1), ..., w_final, b_final, o
    x_ref = refs[0]
    layer_refs = refs[1:1 + 2 * num_layers]
    wf_ref = refs[1 + 2 * num_layers]      # (1, D_last) f32
    bf_ref = refs[2 + 2 * num_layers]      # (1, 1)      f32
    o_ref = refs[3 + 2 * num_layers]       # (TILE_B, 1) f32

    act_bf16 = x_ref[...]                  # (TILE_B, Din) bf16
    act_f32 = None
    for l in range(num_layers):
        w = layer_refs[2 * l][...]         # (Din_l, Dout_l) bf16 (BN folded)
        b = layer_refs[2 * l + 1][...]     # (1, Dout_l)     f32  (bias+BN folded)
        y = jnp.dot(act_bf16, w, preferred_element_type=jnp.float32)  # MXU
        act_f32 = jnp.clip(y + b, 0.0, 6.0)            # bias + ReLU6 in f32 (VPU)
        act_bf16 = act_f32.astype(jnp.bfloat16)

    # Final Linear(., 1): VPU multiply + row reduction (no 1-wide MXU push).
    out = jnp.sum(act_f32 * wf_ref[...], axis=-1, keepdims=True) + bf_ref[...]
    o_ref[...] = out.astype(o_ref.dtype)


def fcn_fused_forward(x_cat, layers, w_final, b_final, *, tile_b=512):
    """Run the whole FCN forward in one pallas_call.

    x_cat:   (B, Din) concatenated feature inputs (any float dtype)
    layers:  list of (W_bf16 (din, dout), b_f32 (1, dout)) with BN folded in
    w_final: (1, D_last) f32,  b_final: (1, 1) f32
    """
    assert len(layers) >= 1
    B, Din = x_cat.shape
    tile_b = min(tile_b, B)

    x = x_cat.astype(jnp.bfloat16)
    pad = (-B) % tile_b
    if pad:
        x = jnp.pad(x, ((0, pad), (0, 0)))
    Bp = B + pad
    grid = (Bp // tile_b,)

    num_layers = len(layers)
    in_specs = [pl.BlockSpec((tile_b, Din), lambda i: (i, 0))]
    args = [x]
    for (w, b) in layers:
        in_specs.append(pl.BlockSpec(w.shape, lambda i: (0, 0)))
        in_specs.append(pl.BlockSpec(b.shape, lambda i: (0, 0)))
        args.extend([w, b])
    in_specs.append(pl.BlockSpec(w_final.shape, lambda i: (0, 0)))
    in_specs.append(pl.BlockSpec(b_final.shape, lambda i: (0, 0)))
    args.extend([w_final, b_final])

    kernel = functools.partial(_fcn_fused_kernel, num_layers=num_layers)
    out = pl.pallas_call(
        kernel,
        out_shape=jax.ShapeDtypeStruct((Bp, 1), jnp.float32),
        grid=grid,
        in_specs=in_specs,
        out_specs=pl.BlockSpec((tile_b, 1), lambda i: (i, 0)),
        compiler_params=pltpu.CompilerParams(
            dimension_semantics=("parallel",)),   # batch axis -> 2 TCs on v7x
    )(*args)
    return out[:B]


# ----------------------------------------------------------------------------
# Deterministic parameter construction with BN folding + block-diag branches
# ----------------------------------------------------------------------------
def _init_linear(key, din, dout):
    kw, kb = jax.random.split(key)
    bound = 1.0 / jnp.sqrt(jnp.float32(din))
    w = jax.random.uniform(kw, (din, dout), jnp.float32, -bound, bound)
    b = jax.random.uniform(kb, (1, dout), jnp.float32, -bound, bound)
    return w, b


def _init_bn_folded(key, dout):
    k1, k2, k3, k4 = jax.random.split(key, 4)
    gamma = 1.0 + 0.1 * jax.random.normal(k1, (1, dout), jnp.float32)
    beta = 0.1 * jax.random.normal(k2, (1, dout), jnp.float32)
    run_mean = 0.1 * jax.random.normal(k3, (1, dout), jnp.float32)
    run_var = 1.0 + 0.1 * jnp.abs(jax.random.normal(k4, (1, dout), jnp.float32))
    scale = gamma / jnp.sqrt(run_var + _BN_EPS)
    shift = beta - run_mean * scale
    return scale, shift


def _folded_layer(key, din, dout):
    k1, k2 = jax.random.split(key)
    w, b = _init_linear(k1, din, dout)
    scale, shift = _init_bn_folded(k2, dout)
    return w * scale, b * scale + shift        # W' = W*scale, b' = b*scale+shift


def build_fcn_params(key, feature_layer_sizes, fcn_layer_sizes):
    feats = list(feature_layer_sizes.keys())
    depths = {len(s) - 1 for s in feature_layer_sizes.values()}
    # TODO(synk): unequal per-branch depths would need identity padding of the
    # shorter branches before block-diagonal fusion; not needed for this config.
    assert len(depths) == 1, "feature branches must have equal depth"
    depth = depths.pop()

    # Per-branch folded layers.
    branch = {f: [] for f in feats}
    for f in feats:
        sizes = feature_layer_sizes[f]
        din = sizes[0]
        for dout in sizes[1:]:
            key, k = jax.random.split(key)
            branch[f].append(_folded_layer(k, din, dout))
            din = dout

    # Block-diagonal combination per depth level (branches + concat fused).
    layers = []
    for l in range(depth):
        blocks = [branch[f][l][0] for f in feats]
        biases = [branch[f][l][1] for f in feats]
        din_tot = sum(w.shape[0] for w in blocks)
        dout_tot = sum(w.shape[1] for w in blocks)
        W = jnp.zeros((din_tot, dout_tot), jnp.float32)
        r = c = 0
        for w in blocks:
            W = W.at[r:r + w.shape[0], c:c + w.shape[1]].set(w)
            r += w.shape[0]
            c += w.shape[1]
        layers.append((W.astype(jnp.bfloat16), jnp.concatenate(biases, axis=-1)))

    # FCN trunk hidden layers (Dropout is identity in inference mode).
    # TODO(synk): training-mode dropout masking is intentionally not applied.
    din = fcn_layer_sizes[0]
    assert din == layers[-1][1].shape[-1], "concat width must match fcn input"
    for dout in fcn_layer_sizes[1:]:
        key, k = jax.random.split(key)
        w, b = _folded_layer(k, din, dout)
        layers.append((w.astype(jnp.bfloat16), b))
        din = dout

    # Final Linear(din, 1) -> row vector for the VPU-reduction epilogue.
    key, k = jax.random.split(key)
    w, b = _init_linear(k, din, 1)
    w_final = w.reshape(1, din)                # (din, 1) -> (1, din)
    b_final = b.reshape(1, 1)
    return layers, w_final, b_final


# ----------------------------------------------------------------------------
# Pure-JAX reference (same numerics: bf16 operands, f32 accumulation)
# ----------------------------------------------------------------------------
def fcn_reference(x_cat, layers, w_final, b_final):
    act_bf16 = x_cat.astype(jnp.bfloat16)
    act_f32 = None
    for (w, b) in layers:
        y = jnp.dot(act_bf16, w, preferred_element_type=jnp.float32)
        act_f32 = jnp.clip(y + b, 0.0, 6.0)
        act_bf16 = act_f32.astype(jnp.bfloat16)
    return jnp.sum(act_f32 * w_final, axis=-1, keepdims=True) + b_final


if __name__ == "__main__":
    # Small deterministic config consistent with the module:
    #   feature_layer_sizes = {"mutation": (32, 16), "expression": (24, 16)}
    #   fcn_layer_sizes     = (32, 16)   (32 = 16 + 16 from concat)
    feature_layer_sizes = {"mutation": (32, 16), "expression": (24, 16)}
    fcn_layer_sizes = (32, 16)
    batch = 8

    key = jax.random.PRNGKey(0)
    key, kp, kx1, kx2 = jax.random.split(key, 4)
    layers, w_final, b_final = build_fcn_params(
        kp, feature_layer_sizes, fcn_layer_sizes)

    X = {
        "mutation": jax.random.normal(kx1, (batch, 32), jnp.float32),
        "expression": jax.random.normal(kx2, (batch, 24), jnp.float32),
    }
    # Concatenate feature inputs once (branches are block-diagonal in the
    # fused weight, so this replaces both per-branch stacks and torch.cat).
    x_cat = jnp.concatenate([X[f] for f in feature_layer_sizes], axis=-1)

    out = fcn_fused_forward(x_cat, layers, w_final, b_final)
    out = jax.block_until_ready(out)
    assert out.shape == (batch, 1), out.shape
    assert bool(jnp.all(jnp.isfinite(out)))

    ref = fcn_reference(x_cat, layers, w_final, b_final)
    assert bool(jnp.allclose(out, ref, atol=2e-2, rtol=2e-2)), (out, ref)

    print("KERNEL_OK")
</pallas_src>

<mosaic_0001>
module attributes {stable_mosaic.version = 11 : i64} {
  func.func @_fcn_fused_kernel(%arg0: i32, %arg1: memref<8x56xbf16, #tpu.memory_space<vmem>>, %arg2: memref<56x32xbf16, #tpu.memory_space<vmem>>, %arg3: memref<1x32xf32, #tpu.memory_space<vmem>>, %arg4: memref<32x16xbf16, #tpu.memory_space<vmem>>, %arg5: memref<1x16xf32, #tpu.memory_space<vmem>>, %arg6: memref<1x16xf32, #tpu.memory_space<vmem>>, %arg7: memref<1x1xf32, #tpu.memory_space<vmem>>, %arg8: memref<8x1xf32, #tpu.memory_space<vmem>>) attributes {dimension_semantics = [#tpu.dimension_semantics<parallel>], iteration_bounds = array<i64: 1>, scalar_prefetch = 0 : i64, scratch_operands = 0 : i64, tpu.core_type = #tpu.core_type<tc>, window_params = [{transform_indices = @transform_0, window_bounds = array<i64: 8, 56>}, {pipeline_mode = #tpu.pipeline_mode<synchronous>, transform_indices = @transform_1, window_bounds = array<i64: 56, 32>}, {pipeline_mode = #tpu.pipeline_mode<synchronous>, transform_indices = @transform_2, window_bounds = array<i64: 1, 32>}, {pipeline_mode = #tpu.pipeline_mode<synchronous>, transform_indices = @transform_3, window_bounds = array<i64: 32, 16>}, {pipeline_mode = #tpu.pipeline_mode<synchronous>, transform_indices = @transform_4, window_bounds = array<i64: 1, 16>}, {pipeline_mode = #tpu.pipeline_mode<synchronous>, transform_indices = @transform_5, window_bounds = array<i64: 1, 16>}, {pipeline_mode = #tpu.pipeline_mode<synchronous>, transform_indices = @transform_6, window_bounds = array<i64: 1, 1>}, {transform_indices = @transform_7, window_bounds = array<i64: 8, 1>}]} {
    %c0 = arith.constant 0 : index
    %c0_0 = arith.constant 0 : index
    %0 = vector.load %arg1[%c0, %c0_0] : memref<8x56xbf16, #tpu.memory_space<vmem>>, vector<8x56xbf16>
    %c0_1 = arith.constant 0 : index
    %c0_2 = arith.constant 0 : index
    %1 = vector.load %arg2[%c0_1, %c0_2] : memref<56x32xbf16, #tpu.memory_space<vmem>>, vector<56x32xbf16>
    %c0_3 = arith.constant 0 : index
    %c0_4 = arith.constant 0 : index
    %2 = vector.load %arg3[%c0_3, %c0_4] : memref<1x32xf32, #tpu.memory_space<vmem>>, vector<1x32xf32>
    %cst = arith.constant dense<0.000000e+00> : vector<8x32xf32>
    %3 = tpu.matmul %0, %1, %cst {dimension_numbers = #tpu.dot_dimension_numbers<[1], [0], [0], [1], [0, 0, 1, 1], [], []>} : vector<8x56xbf16>, vector<56x32xbf16>, vector<8x32xf32> -> vector<8x32xf32>
    %4 = vector.broadcast %2 : vector<1x32xf32> to vector<8x32xf32>
    %5 = arith.addf %3, %4 : vector<8x32xf32>
    %cst_5 = arith.constant 0.000000e+00 : f32
    %cst_6 = arith.constant 6.000000e+00 : f32
    %6 = vector.broadcast %cst_5 : f32 to vector<8x32xf32>
    %7 = arith.maximumf %6, %5 : vector<8x32xf32>
    %8 = vector.broadcast %cst_6 : f32 to vector<8x32xf32>
    %9 = arith.minimumf %8, %7 : vector<8x32xf32>
    %10 = arith.truncf %9 : vector<8x32xf32> to vector<8x32xbf16>
    %c0_7 = arith.constant 0 : index
    %c0_8 = arith.constant 0 : index
    %11 = vector.load %arg4[%c0_7, %c0_8] : memref<32x16xbf16, #tpu.memory_space<vmem>>, vector<32x16xbf16>
    %c0_9 = arith.constant 0 : index
    %c0_10 = arith.constant 0 : index
    %12 = vector.load %arg5[%c0_9, %c0_10] : memref<1x16xf32, #tpu.memory_space<vmem>>, vector<1x16xf32>
    %cst_11 = arith.constant dense<0.000000e+00> : vector<8x16xf32>
    %13 = tpu.matmul %10, %11, %cst_11 {dimension_numbers = #tpu.dot_dimension_numbers<[1], [0], [0], [1], [0, 0, 1, 1], [], []>} : vector<8x32xbf16>, vector<32x16xbf16>, vector<8x16xf32> -> vector<8x16xf32>
    %14 = vector.broadcast %12 : vector<1x16xf32> to vector<8x16xf32>
    %15 = arith.addf %13, %14 : vector<8x16xf32>
    %cst_12 = arith.constant 0.000000e+00 : f32
    %cst_13 = arith.constant 6.000000e+00 : f32
    %16 = vector.broadcast %cst_12 : f32 to vector<8x16xf32>
    %17 = arith.maximumf %16, %15 : vector<8x16xf32>
    %18 = vector.broadcast %cst_13 : f32 to vector<8x16xf32>
    %19 = arith.minimumf %18, %17 : vector<8x16xf32>
    %c0_14 = arith.constant 0 : index
    %c0_15 = arith.constant 0 : index
    %20 = vector.load %arg6[%c0_14, %c0_15] : memref<1x16xf32, #tpu.memory_space<vmem>>, vector<1x16xf32>
    %21 = vector.broadcast %20 : vector<1x16xf32> to vector<8x16xf32>
    %22 = arith.mulf %19, %21 : vector<8x16xf32>
    %cst_16 = arith.constant dense<0.000000e+00> : vector<8xf32>
    %23 = vector.multi_reduction <add>, %22, %cst_16 [1] : vector<8x16xf32> to vector<8xf32>
    %24 = vector.shape_cast %23 : vector<8xf32> to vector<8x1xf32>
    %c0_17 = arith.constant 0 : index
    %c0_18 = arith.constant 0 : index
    %25 = vector.load %arg7[%c0_17, %c0_18] : memref<1x1xf32, #tpu.memory_space<vmem>>, vector<1x1xf32>
    %26 = vector.broadcast %25 : vector<1x1xf32> to vector<8x1xf32>
    %27 = arith.addf %24, %26 : vector<8x1xf32>
    %c0_19 = arith.constant 0 : index
    %c0_20 = arith.constant 0 : index
    %28 = vector.load %arg8[%c0_19, %c0_20] : memref<8x1xf32, #tpu.memory_space<vmem>>, vector<8x1xf32>
    tpu.vector_store %arg8[%c0_19, %c0_20], %27 {strides = array<i32>} : memref<8x1xf32, #tpu.memory_space<vmem>>, vector<8x1xf32>,
    return
  }
  func.func @transform_0(%arg0: i32) -> (i32, i32) {
    %c0_i32 = arith.constant 0 : i32
    %c0_i32_0 = arith.constant 0 : i32
    return %arg0, %c0_i32 : i32, i32
  }
  func.func @transform_1(%arg0: i32) -> (i32, i32) {
    %c0_i32 = arith.constant 0 : i32
    %c0_i32_0 = arith.constant 0 : i32
    %c0_i32_1 = arith.constant 0 : i32
    return %c0_i32, %c0_i32_0 : i32, i32
  }
  func.func @transform_2(%arg0: i32) -> (i32, i32) {
    %c0_i32 = arith.constant 0 : i32
    %c0_i32_0 = arith.constant 0 : i32
    %c0_i32_1 = arith.constant 0 : i32
    return %c0_i32, %c0_i32_0 : i32, i32
  }
  func.func @transform_3(%arg0: i32) -> (i32, i32) {
    %c0_i32 = arith.constant 0 : i32
    %c0_i32_0 = arith.constant 0 : i32
    %c0_i32_1 = arith.constant 0 : i32
    return %c0_i32, %c0_i32_0 : i32, i32
  }
  func.func @transform_4(%arg0: i32) -> (i32, i32) {
    %c0_i32 = arith.constant 0 : i32
    %c0_i32_0 = arith.constant 0 : i32
    %c0_i32_1 = arith.constant 0 : i32
    return %c0_i32, %c0_i32_0 : i32, i32
  }
  func.func @transform_5(%arg0: i32) -> (i32, i32) {
    %c0_i32 = arith.constant 0 : i32
    %c0_i32_0 = arith.constant 0 : i32
    %c0_i32_1 = arith.constant 0 : i32
    return %c0_i32, %c0_i32_0 : i32, i32
  }
  func.func @transform_6(%arg0: i32) -> (i32, i32) {
    %c0_i32 = arith.constant 0 : i32
    %c0_i32_0 = arith.constant 0 : i32
    %c0_i32_1 = arith.constant 0 : i32
    return %c0_i32, %c0_i32_0 : i32, i32
  }
  func.func @transform_7(%arg0: i32) -> (i32, i32) {
    %c0_i32 = arith.constant 0 : i32
    %c0_i32_0 = arith.constant 0 : i32
    return %arg0, %c0_i32 : i32, i32
  }
}

</mosaic_0001>

<llo_original>
// kernel: tpu_custom_call.1
$region0: #{tpu_custom_call.1}
  #allocation0 [shape = 'u32[]', space=smem, size = 0x4, offset = 0x4, fixed_abs, tag = 'smem constant byte address 0x4 - core index']
  #allocation1 [shape = 'u32[144,128]{1,0:T(1,128)}', space=vmem, size = 0x12000, scoped, tag = 'internal scratch']
  #allocation2 [shape = 'f32[1,1]{1,0:T(1,128)S(1)}', space=vmem, size = 0x200, scoped, tag = 'scoped memory for tpu_custom_call.1']
  %s0 = inlined_call_operand.vmem [shape: bf16[8,56], index: 0, kind: input, shape index: {}]
  %s1 = inlined_call_operand.vmem [shape: bf16[56,32], index: 1, kind: input, shape index: {}]
  %s2 = inlined_call_operand.vmem [shape: f32[1,32], index: 2, kind: input, shape index: {}]
  %s3 = inlined_call_operand.vmem [shape: bf16[32,16], index: 3, kind: input, shape index: {}]
  %s4 = inlined_call_operand.vmem [shape: f32[1,16], index: 4, kind: input, shape index: {}]
  %s5 = inlined_call_operand.vmem [shape: f32[1,16], index: 5, kind: input, shape index: {}]
  %s6 = inlined_call_operand.<no memory space> [shape: f32[1,1], index: 6, kind: input, shape index: {}]
  %s7 = inlined_call_operand.vmem [shape: f32[8,1], index: 7, kind: output, shape index: {}]
  %s8 = sld [smem:[#allocation0]]
  $region38: #{tpu_custom_call.1} parent=0
    _
  %s10 = ssub.s32 1, %s8
  %s11 = scalar_select 0, %s10, %s8
  %v12 = vstv %s6
  %13 = vst [vmem:[#allocation2] sm:$0x1] %v12
  // Predicated region
  $region2: #{tpu_custom_call.1} parent=0 // pred_check
    _
  $region3: #{tpu_custom_call.1} parent=0 // pred_check_branch
    %15 = sbr.rel (0) target = $region5
  $region4: #{tpu_custom_call.1} parent=0 // pred_region
    _
  $region5: #{tpu_custom_call.1} parent=0 // pred_fallthru
    _
  // Predicated region
  $region6: #{tpu_custom_call.1} parent=0 // pred_check
    _
  $region7: #{tpu_custom_call.1} parent=0 // pred_check_branch
    %17 = sbr.rel (0) target = $region9
  $region8: #{tpu_custom_call.1} parent=0 // pred_region
    _
  $region9: #{tpu_custom_call.1} parent=0 // pred_fallthru
    _
  // Predicated region
  $region10: #{tpu_custom_call.1} parent=0 // pred_check
    _
  $region11: #{tpu_custom_call.1} parent=0 // pred_check_branch
    %19 = sbr.rel (0) target = $region13
  $region12: #{tpu_custom_call.1} parent=0 // pred_region
    _
  $region13: #{tpu_custom_call.1} parent=0 // pred_fallthru
    _
  // Predicated region
  $region14: #{tpu_custom_call.1} parent=0 // pred_check
    _
  $region15: #{tpu_custom_call.1} parent=0 // pred_check_branch
    %21 = sbr.rel (0) target = $region17
  $region16: #{tpu_custom_call.1} parent=0 // pred_region
    _
  $region17: #{tpu_custom_call.1} parent=0 // pred_fallthru
    _
  // Predicated region
  $region18: #{tpu_custom_call.1} parent=0 // pred_check
    _
  $region19: #{tpu_custom_call.1} parent=0 // pred_check_branch
    %23 = sbr.rel (0) target = $region21
  $region20: #{tpu_custom_call.1} parent=0 // pred_region
    _
  $region21: #{tpu_custom_call.1} parent=0 // pred_fallthru
    _
  // Predicated region
  $region22: #{tpu_custom_call.1} parent=0 // pred_check
    _
  $region23: #{tpu_custom_call.1} parent=0 // pred_check_branch
    %25 = sbr.rel (0) target = $region25
  $region24: #{tpu_custom_call.1} parent=0 // pred_region
    _
  $region25: #{tpu_custom_call.1} parent=0 // pred_fallthru
    _
  // Predicated region
  $region26: #{tpu_custom_call.1} parent=0 // pred_check
    _
  $region27: #{tpu_custom_call.1} parent=0 // pred_check_branch
    %27 = sbr.rel (0) target = $region29
  $region28: #{tpu_custom_call.1} parent=0 // pred_region
    _
  $region29: #{tpu_custom_call.1} parent=0 // pred_fallthru
    _
  %v29 = vld [vmem:[%s0] sm:$0xf]
  %v30 = vld [vmem:[%s1] sm:$0xf]
  %v31 = vld [vmem:[%s1 + $0x4] sm:$0xf]
  %v32 = vld [vmem:[%s1 + $0x8] sm:$0xf]
  %v33 = vld [vmem:[%s1 + $0xc] sm:$0xf]
  %v34 = vld [vmem:[%s1 + $0x10] sm:$0xf]
  %v35 = vld [vmem:[%s1 + $0x14] sm:$0xf]
  %v36 = vld [vmem:[%s1 + $0x18] sm:$0xf]
  %v37 = vld [vmem:[%s2] sm:$0x1]
  %v39 = vlaneseq
  %v40 = vshrl.u32 %v39, 7
  %v41 = vsub.s32 0, %v40
  %v42 = vrot.slane %v37, %v41
  %v51 = vunpack.c.l.b16 %v30
  %v52 = vunpack.c.l.b16 %v31
  %v53 = vunpack.c.l.b16 %v32
  %v54 = vunpack.c.l.b16 %v33
  %v55 = vunpack.c.l.b16 %v34
  %v56 = vunpack.c.l.b16 %v35
  %v57 = vunpack.c.l.b16 %v36
  %v58 = vpack.c.b16 %v52, %v51
  %v59 = vpack.c.b16 %v54, %v53
  %v60 = vpack.c.b16 %v56, %v55
  %v61 = vpack.c.b16 %v57, %v57
  %vm65 = vcmask 457728
  %v67 = vsel %vm65, %v29, 0
  %vm69 = vcmask 1043456
  %v71 = vsel %vm69, %v61, 0
  %73 = vmatprep.subr.bf16.mxu0 0
  %74 = vmatpush1.bf16.msra.mxu0 %v58
  %75 = vmatprep.subr.bf16.mxu0 0
  %76 = vmatpush1.bf16.msra.mxu0 %v59
  %77 = vmatprep.subr.bf16.mxu0 0
  %78 = vmatpush1.bf16.msra.mxu0 %v60
  %79 = vmatprep.subr.bf16.mxu0 0
  %80 = vmatpush1.bf16.msra.mxu0 %v71
  %81 = vmatprep.subr.bf16.mxu0 0
  %82 = vmatpush1.bf16.msra.mxu0 0
  %83 = vmatprep.subr.bf16.mxu0 0
  %84 = vmatpush1.bf16.msra.mxu0 0
  %85 = vmatprep.subr.bf16.mxu0 0
  %86 = vmatpush1.bf16.msra.mxu0 0
  %87 = vmatprep.subr.bf16.mxu0 0
  %88 = vmatpush1.bf16.msra.mxu0 0
  %89 = vmatprep.subr.bf16.mxu0 0
  %90 = vmatpush1.bf16.msra.mxu0 0
  %91 = vmatprep.subr.bf16.mxu0 0
  %92 = vmatpush1.bf16.msra.mxu0 0
  %93 = vmatprep.subr.bf16.mxu0 0
  %94 = vmatpush1.bf16.msra.mxu0 0
  %95 = vmatprep.subr.bf16.mxu0 0
  %96 = vmatpush1.bf16.msra.mxu0 0
  %97 = vmatprep.subr.bf16.mxu0 0
  %98 = vmatpush1.bf16.msra.mxu0 0
  %99 = vmatprep.subr.bf16.mxu0 0
  %100 = vmatpush1.bf16.msra.mxu0 0
  %101 = vmatprep.subr.bf16.mxu0 0
  %102 = vmatpush1.bf16.msra.mxu0 0
  %103 = vmatprep.subr.bf16.mxu0 0
  %104 = vmatpush1.bf16.msra.mxu0 0
  %105 = vmatprep.mubr.bf16.mxu0 0
  %106 = vmatmul.mubr.bf16.gmra.mrb[0].mxu0 %v67
  %v107 = vpop.f32.mrb[0].mxu0
  %v108 = vadd.f32 %v42, %v107
  %v109 = vpop.f32.mrb[0].mxu0
  %v110 = vpop.f32.mrb[0].mxu0
  %v111 = vpop.f32.mrb[0].mxu0
  %112 = vdwg.mxu0
  %v113 = vmax.f32 %v108, 0.0
  %v114 = vmin.f32 %v113, 6.0
  %v115 = vpack.c.bf16 %v114, %v114
  %v116 = vld [vmem:[%s3] sm:$0xf]
  %v117 = vld [vmem:[%s3 + $0x4] sm:$0xf]
  %v118 = vld [vmem:[%s3 + $0x8] sm:$0xf]
  %v119 = vld [vmem:[%s3 + $0xc] sm:$0xf]
  %v120 = vld [vmem:[%s4] sm:$0x1]
  %v122 = vlaneseq
  %v123 = vshrl.u32 %v122, 7
  %v124 = vsub.s32 0, %v123
  %v125 = vrot.slane %v120, %v124
  %v131 = vunpack.c.l.b16 %v116
  %v132 = vunpack.c.l.b16 %v117
  %v133 = vunpack.c.l.b16 %v118
  %v134 = vunpack.c.l.b16 %v119
  %v135 = vpack.c.b16 %v132, %v131
  %v136 = vpack.c.b16 %v134, %v133
  %vm139 = vcmask 261120
  %v141 = vsel %vm139, %v115, 0
  %143 = vmatprep.subr.bf16.mxu0 0
  %144 = vmatpush1.bf16.msra.mxu0 %v135
  %145 = vmatprep.subr.bf16.mxu0 0
  %146 = vmatpush1.bf16.msra.mxu0 %v136
  %147 = vmatprep.subr.bf16.mxu0 0
  %148 = vmatpush1.bf16.msra.mxu0 0
  %149 = vmatprep.subr.bf16.mxu0 0
  %150 = vmatpush1.bf16.msra.mxu0 0
  %151 = vmatprep.subr.bf16.mxu0 0
  %152 = vmatpush1.bf16.msra.mxu0 0
  %153 = vmatprep.subr.bf16.mxu0 0
  %154 = vmatpush1.bf16.msra.mxu0 0
  %155 = vmatprep.subr.bf16.mxu0 0
  %156 = vmatpush1.bf16.msra.mxu0 0
  %157 = vmatprep.subr.bf16.mxu0 0
  %158 = vmatpush1.bf16.msra.mxu0 0
  %159 = vmatprep.subr.bf16.mxu0 0
  %160 = vmatpush1.bf16.msra.mxu0 0
  %161 = vmatprep.subr.bf16.mxu0 0
  %162 = vmatpush1.bf16.msra.mxu0 0
  %163 = vmatprep.subr.bf16.mxu0 0
  %164 = vmatpush1.bf16.msra.mxu0 0
  %165 = vmatprep.subr.bf16.mxu0 0
  %166 = vmatpush1.bf16.msra.mxu0 0
  %167 = vmatprep.subr.bf16.mxu0 0
  %168 = vmatpush1.bf16.msra.mxu0 0
  %169 = vmatprep.subr.bf16.mxu0 0
  %170 = vmatpush1.bf16.msra.mxu0 0
  %171 = vmatprep.subr.bf16.mxu0 0
  %172 = vmatpush1.bf16.msra.mxu0 0
  %173 = vmatprep.subr.bf16.mxu0 0
  %174 = vmatpush1.bf16.msra.mxu0 0
  %175 = vmatprep.mubr.bf16.mxu0 0
  %176 = vmatmul.mubr.bf16.gmra.mrb[0].mxu0 %v141
  %v177 = vpop.f32.mrb[0].mxu0
  %v178 = vadd.f32 %v125, %v177
  %v179 = vpop.f32.mrb[0].mxu0
  %v180 = vpop.f32.mrb[0].mxu0
  %v181 = vpop.f32.mrb[0].mxu0
  %182 = vdwg.mxu0
  %v183 = vmax.f32 %v178, 0.0
  %v184 = vmin.f32 %v183, 6.0
  %v185 = vld [vmem:[%s5] sm:$0x1]
  %v187 = vlaneseq
  %v188 = vshrl.u32 %v187, 7
  %v189 = vsub.s32 0, %v188
  %v190 = vrot.slane %v185, %v189
  %v192 = vmul.f32 %v184, %v190
  %vm193 = vcmask 130048
  %v194 = vsel %vm193, %v192, 0.0
  %195 = vadd.xlane.f32.xlu0 %v194
  %v196 = vpop.xlane.xlu0 %195
  %v197 = vld [vmem:[#allocation2] sm:$0x1]
  %v199 = vlaneseq
  %v200 = vshrl.u32 %v199, 7
  %v201 = vsub.s32 0, %v200
  %v202 = vrot.slane %v197, %v201
  %v204 = vadd.f32 %v196, %v202
  %vm205 = vcmask 7168
  %206 = vst.msk [vmem:[%s7] sm:$0xff] %vm205, %v204
  // Predicated region
  $region30: #{tpu_custom_call.1} parent=0 // pred_check
    _
  $region31: #{tpu_custom_call.1} parent=0 // pred_check_branch
    %208 = sbr.rel (0) target = $region33
  $region32: #{tpu_custom_call.1} parent=0 // pred_region
    _
  $region33: #{tpu_custom_call.1} parent=0 // pred_fallthru
    _
  // Predicated region
  $region34: #{tpu_custom_call.1} parent=0 // pred_check
    _
  $region35: #{tpu_custom_call.1} parent=0 // pred_check_branch
    %210 = sbr.rel (0) target = $region37
  $region36: #{tpu_custom_call.1} parent=0 // pred_region
    _
  $region37: #{tpu_custom_call.1} parent=0 // pred_fallthru
    _

</llo_original>
